<compile_context>
chip_gen: v6e
topology: v6e:2x2x1
jax: 0.10.0
libtpu: 0.0.40
codegen_flags: <defaults>
</compile_context>

<pallas_src>
import functools

import jax
import jax.numpy as jnp
from jax.experimental import pallas as pl
from jax.experimental.pallas import tpu as pltpu


def _moments_kernel(x_ref, s1_ref, s2_ref, m2_ref, *,
                    c_real, l_total, mask_c, mask_l, gram_dtype):
    """Accumulates per-(split, pack) raw moments over the (n, l) reduction axes."""
    n_idx = pl.program_id(2)
    l_idx = pl.program_id(3)

    @pl.when(jnp.logical_and(n_idx == 0, l_idx == 0))
    def _init():
        s1_ref[...] = jnp.zeros_like(s1_ref)
        s2_ref[...] = jnp.zeros_like(s2_ref)
        m2_ref[...] = jnp.zeros_like(m2_ref)

    cp, lc = x_ref.shape
    xf = x_ref[...].astype(jnp.float32)                      # (cp, lc)

    # Mask out-of-range channels / tail columns of edge blocks (their VMEM contents are
    # unspecified); masks are only materialized when the shape is actually ragged.
    if mask_c or mask_l:
        ok = None
        if mask_c:
            row = (jax.lax.broadcasted_iota(jnp.int32, (cp, lc), 0)
                   + pl.program_id(1) * cp)
            ok = row < c_real
        if mask_l:
            col = jax.lax.broadcasted_iota(jnp.int32, (cp, lc), 1) + l_idx * lc
            okl = col < l_total
            ok = okl if ok is None else jnp.logical_and(ok, okl)
        xf = jnp.where(ok, xf, 0.0)

    s1_ref[...] += jnp.sum(xf, axis=1, keepdims=True)
    s2_ref[...] += jnp.sum(xf * xf, axis=1, keepdims=True)
    xg = xf.astype(gram_dtype)
    m2_ref[...] += jax.lax.dot_general(
        xg, xg, (((1,), (1,)), ((), ())), preferred_element_type=jnp.float32)


def _finalize_kernel(w_ref, b_ref, s1p_ref, s2p_ref, m2p_ref, a_ref, c_ref, *,
                     d_eff, m, T, eps, eps_bn, c_real):
    """Combines split partials and builds the fused per-pack transform y = A @ x + c."""
    pack = pl.program_id(0)
    cp = w_ref.shape[0]

    s1 = jnp.sum(s1p_ref[...], axis=0)                       # (cp, 1)
    s2 = jnp.sum(s2p_ref[...], axis=0)                       # (cp, 1)
    m2 = jnp.sum(m2p_ref[...], axis=0)                       # (cp, cp)

    row = jax.lax.broadcasted_iota(jnp.int32, (cp, cp), 0)
    col = jax.lax.broadcasted_iota(jnp.int32, (cp, cp), 1)
    eye = (row == col).astype(jnp.float32)
    same_group = ((row // d_eff) == (col // d_eff)).astype(jnp.float32)
    ch = jax.lax.broadcasted_iota(jnp.int32, (cp, 1), 0) + pack * cp
    valid = (ch < c_real).astype(jnp.float32)                # (cp, 1) real-channel mask

    def to_row(v_col):                                       # (cp,1) -> (1,cp), robust
        return jnp.sum(eye * v_col, axis=0, keepdims=True)

    mean = s1 * (1.0 / m)                                    # (cp, 1)
    cen = s2 - s1 * mean                                     # sum (x-mean)^2
    var = cen * (1.0 / (m - 1))                              # unbiased (torch.std)
    std = jnp.sqrt(jnp.maximum(var, 0.0)) + eps_bn
    inv_std = 1.0 / std                                      # (cp, 1)
    inv_std_r = to_row(inv_std)                              # (1, cp)

    # standardized centered gram: off-diag from the MXU gram, diag from f32 accumulators
    xcxc = m2 - mean * to_row(s1)                            # sum xc xc^T
    g_off = inv_std * xcxc * inv_std_r                       # (cp, cp)
    g_diag = cen * inv_std * inv_std                         # (cp, 1)
    diag_sigma = valid * (g_diag + eps / m)                  # eps*I only on real channels
    sigma = same_group * (1.0 - eye) * g_off + eye * diag_sigma

    # per-group trace normalization (guard fully-padded phantom groups)
    trace = jnp.sum(same_group * to_row(diag_sigma), axis=1, keepdims=True)
    tr_inv = jnp.where(trace > 0.0, 1.0 / trace, 0.0)        # (cp, 1) per-row group 1/trace
    sigma_n = sigma * tr_inv

    # Newton-Schulz-style iteration, exactly as in the module:
    #   P <- -0.5 * (1.5 * P) + matrix_power(P, 3) @ sigma_n
    pmat = eye
    for _ in range(T):
        p2 = jnp.dot(pmat, pmat, preferred_element_type=jnp.float32)
        p3 = jnp.dot(p2, pmat, preferred_element_type=jnp.float32)
        pmat = -0.75 * pmat + jnp.dot(p3, sigma_n, preferred_element_type=jnp.float32)
    wm = pmat * jnp.sqrt(tr_inv)

    # fold per-channel normalization + affine:  y = A @ x + c
    a_mat = (w_ref[...] * wm) * inv_std_r                    # diag(w) @ wm @ diag(1/std)
    c_vec = b_ref[...] - jnp.sum(a_mat * to_row(mean), axis=1, keepdims=True)
    a_ref[...] = a_mat.astype(a_ref.dtype)                   # emitted in compute dtype
    c_ref[...] = c_vec


def _apply_kernel(a_ref, c_ref, x_ref, o_ref, *, c_real, mask_c, compute_dtype):
    """Streams (cp, lc) chunks of X and applies the fused transform  y = A @ x + c."""
    a = a_ref[...]                                           # (cp, cp), compute dtype
    cvec = c_ref[...]                                        # (cp, 1) f32
    x = x_ref[...]                                           # (cp, lc)
    if mask_c:
        cp, lc = x.shape
        row = (jax.lax.broadcasted_iota(jnp.int32, (cp, lc), 0)
               + pl.program_id(0) * cp)
        x = jnp.where(row < c_real, x, jnp.zeros_like(x))
    y = jax.lax.dot_general(a, x.astype(compute_dtype),
                            (((1,), (0,)), ((), ())),
                            preferred_element_type=jnp.float32)
    o_ref[...] = (y + cvec).astype(o_ref.dtype)


def coritn_se_forward(X, weight=None, bias=None, *, num_channels=16, T=5,
                      eps=1e-3, eps_bn=1e-5, momentum=0.1,
                      pack_channels=128, l_chunk=2048,
                      compute_dtype=jnp.bfloat16, gram_dtype=jnp.float32,
                      out_dtype=None, stats_splits=None, vmem_limit_bytes=None):
    """JAX/Pallas equivalent of CorItN_SE.forward (training-mode statistics)."""
    del momentum  # TODO(synk): running-stat EMA buffer updates are not materialized.
    N, C, L = X.shape
    d = num_channels
    num_groups = (C - 1) // d + 1
    if out_dtype is None:
        out_dtype = X.dtype

    # ---- pack whole groups into block-diagonal tiles that never exceed C rows ----
    max_gpp = max(1, pack_channels // d)
    gpp = min(max_gpp, num_groups)
    while gpp > 1 and gpp * d > C:       # keep cp <= C so only the LAST block is partial
        gpp -= 1
    cp = gpp * d
    d_eff = d
    if cp > C:                            # single group narrower than num_channels
        cp = C
        d_eff = C
    n_packs = -(-num_groups // gpp)
    if cp % 8 != 0 and not (n_packs == 1 and cp == C):
        raise ValueError(
            "packed channel block (%d) must be a multiple of 8 or equal the channel "
            "count; choose num_channels that is a multiple of 8" % cp)
    c_pack = n_packs * cp
    ragged_c = (c_pack != C)

    # ---- L chunking: lc is a multiple of 128 (or == L), ragged tail is masked ----
    if L <= l_chunk:
        lc = L
    else:
        lc = max(128, (l_chunk // 128) * 128)
    n_lc = -(-L // lc)
    ragged_l = (n_lc * lc != L)

    # ---- stats reduction split (gives v7x's two TensorCores a parallel axis) ----
    if stats_splits is None:
        n_split = 2 if (N >= 2 and N % 2 == 0) else 1
    else:
        n_split = int(stats_splits)
    if n_split < 1 or N % n_split != 0:
        n_split = 1
    npn = N // n_split

    m = N * L

    # weight/bias are tiny; padding them (not X!) to the packed extent is free.
    if weight is None:
        w = jnp.ones((C,), jnp.float32)
    else:
        w = weight.reshape(-1).astype(jnp.float32)
    if bias is None:
        b = jnp.zeros((C,), jnp.float32)
    else:
        b = bias.reshape(-1).astype(jnp.float32)
    w = jnp.pad(w, (0, c_pack - C)).reshape(c_pack, 1)
    b = jnp.pad(b, (0, c_pack - C)).reshape(c_pack, 1)

    extra = {} if vmem_limit_bytes is None else dict(vmem_limit_bytes=vmem_limit_bytes)

    # ---------------- pass 1: partial raw moments ----------------
    moments = functools.partial(_moments_kernel, c_real=C, l_total=L,
                                mask_c=ragged_c, mask_l=ragged_l,
                                gram_dtype=gram_dtype)
    s1p, s2p, m2p = pl.pallas_call(
        moments,
        out_shape=(jax.ShapeDtypeStruct((n_packs, n_split, cp, 1), jnp.float32),
                   jax.ShapeDtypeStruct((n_packs, n_split, cp, 1), jnp.float32),
                   jax.ShapeDtypeStruct((n_packs, n_split, cp, cp), jnp.float32)),
        grid=(n_split, n_packs, npn, n_lc),
        in_specs=[pl.BlockSpec((None, cp, lc),
                               lambda s, p, n, l: (s * npn + n, p, l))],
        out_specs=(pl.BlockSpec((None, None, cp, 1), lambda s, p, n, l: (p, s, 0, 0)),
                   pl.BlockSpec((None, None, cp, 1), lambda s, p, n, l: (p, s, 0, 0)),
                   pl.BlockSpec((None, None, cp, cp), lambda s, p, n, l: (p, s, 0, 0))),
        compiler_params=pltpu.CompilerParams(
            dimension_semantics=("parallel", "parallel", "arbitrary", "arbitrary"),
            **extra),
    )(X)

    # ---------------- pass 2: per-pack fused transform (tiny) ----------------
    fin = functools.partial(_finalize_kernel, d_eff=d_eff, m=m, T=T, eps=eps,
                            eps_bn=eps_bn, c_real=C)
    a_cd, c_off = pl.pallas_call(
        fin,
        out_shape=(jax.ShapeDtypeStruct((n_packs, cp, cp), compute_dtype),
                   jax.ShapeDtypeStruct((n_packs, cp, 1), jnp.float32)),
        grid=(n_packs,),
        in_specs=[
            pl.BlockSpec((cp, 1), lambda p: (p, 0)),
            pl.BlockSpec((cp, 1), lambda p: (p, 0)),
            pl.BlockSpec((None, n_split, cp, 1), lambda p: (p, 0, 0, 0)),
            pl.BlockSpec((None, n_split, cp, 1), lambda p: (p, 0, 0, 0)),
            pl.BlockSpec((None, n_split, cp, cp), lambda p: (p, 0, 0, 0)),
        ],
        out_specs=(pl.BlockSpec((None, cp, cp), lambda p: (p, 0, 0)),
                   pl.BlockSpec((None, cp, 1), lambda p: (p, 0, 0))),
        compiler_params=pltpu.CompilerParams(
            dimension_semantics=("parallel",), **extra),
    )(w, b, s1p, s2p, m2p)

    # ---------------- pass 3: streaming apply  y = A @ x + c ----------------
    apply_k = functools.partial(_apply_kernel, c_real=C, mask_c=ragged_c,
                                compute_dtype=compute_dtype)
    y = pl.pallas_call(
        apply_k,
        out_shape=jax.ShapeDtypeStruct((N, C, L), out_dtype),
        grid=(n_packs, N, n_lc),
        in_specs=[
            pl.BlockSpec((None, cp, cp), lambda p, n, l: (p, 0, 0)),
            pl.BlockSpec((None, cp, 1), lambda p, n, l: (p, 0, 0)),
            pl.BlockSpec((None, cp, lc), lambda p, n, l: (n, p, l)),
        ],
        out_specs=pl.BlockSpec((None, cp, lc), lambda p, n, l: (n, p, l)),
        compiler_params=pltpu.CompilerParams(
            dimension_semantics=("parallel", "parallel", "parallel"), **extra),
    )(a_cd, c_off, X)
    return y


def _reference_forward(X, weight, bias, *, num_channels=16, T=5, eps=1e-3, eps_bn=1e-5):
    """Pure-JAX transcription of the PyTorch module (two-pass, per-group, f32)."""
    N, C, L = X.shape
    num_groups = (C - 1) // num_channels + 1
    outs = []
    for g in range(num_groups):
        c0 = g * num_channels
        c1 = min(c0 + num_channels, C)
        dg = c1 - c0
        x = jnp.transpose(X[:, c0:c1, :], (1, 0, 2)).reshape(dg, -1).astype(jnp.float32)
        m = x.shape[1]
        mean = jnp.mean(x, axis=1, keepdims=True)
        xc = x - mean
        std = jnp.sqrt(jnp.sum(xc * xc, axis=1, keepdims=True) / (m - 1)) + eps_bn
        xcs = xc / std
        eye = jnp.eye(dg, dtype=jnp.float32)
        sigma = (eps / m) * eye + xcs @ xcs.T
        trace_inv = 1.0 / jnp.trace(sigma)
        sigma_n = sigma * trace_inv
        P = eye
        for _ in range(T):
            P = -0.75 * P + (P @ P @ P) @ sigma_n
        wm = P * jnp.sqrt(trace_inv)
        xn = wm @ xcs
        outs.append(jnp.transpose(xn.reshape(dg, N, L), (1, 0, 2)))
    Xn = jnp.concatenate(outs, axis=1)
    return Xn * weight + bias


if __name__ == "__main__":
    key = jax.random.PRNGKey(0)
    kx, kw, kb, kx2 = jax.random.split(key, 4)

    # Ragged channel count (groups of 16, 16, 8) exercises the masked partial channel
    # pack; l_chunk=128 with L=256 gives a multi-step reduction and parallel apply grid.
    N, C, L = 2, 40, 256
    num_channels = 16

    X = jax.random.normal(kx, (N, C, L), dtype=jnp.float32)
    weight = (1.0 + 0.1 * jax.random.normal(kw, (1, C, 1))).astype(jnp.float32)
    bias = (0.02 * jax.random.normal(kb, (1, C, 1))).astype(jnp.float32)

    ref = jax.block_until_ready(
        _reference_forward(X, weight, bias, num_channels=num_channels,
                           T=5, eps=1e-3, eps_bn=1e-5))
    scale = float(jnp.max(jnp.abs(ref)))

    # exact-precision configuration: tight check of the packed / fused algorithm
    out_f32 = jax.block_until_ready(
        coritn_se_forward(X, weight, bias, num_channels=num_channels, T=5,
                          eps=1e-3, eps_bn=1e-5, l_chunk=128,
                          compute_dtype=jnp.float32))
    assert out_f32.shape == (N, C, L)
    err32 = float(jnp.max(jnp.abs(out_f32 - ref)))
    assert err32 <= 2e-3 * scale, (err32, scale)

    # performance configuration: bf16 apply matmul (gram stays f32)
    out_bf16 = jax.block_until_ready(
        coritn_se_forward(X, weight, bias, num_channels=num_channels, T=5,
                          eps=1e-3, eps_bn=1e-5, l_chunk=128,
                          compute_dtype=jnp.bfloat16))
    assert out_bf16.shape == (N, C, L)
    err16 = float(jnp.max(jnp.abs(out_bf16 - ref)))
    assert err16 <= 5e-2 * scale, (err16, scale)

    # ragged L (no multiple-of-128 divisor): exercises the masked tail chunk path
    L2 = 200
    X2 = jax.random.normal(kx2, (N, C, L2), dtype=jnp.float32)
    ref2 = jax.block_until_ready(
        _reference_forward(X2, weight, bias, num_channels=num_channels,
                           T=5, eps=1e-3, eps_bn=1e-5))
    scale2 = float(jnp.max(jnp.abs(ref2)))
    out2 = jax.block_until_ready(
        coritn_se_forward(X2, weight, bias, num_channels=num_channels, T=5,
                          eps=1e-3, eps_bn=1e-5, l_chunk=128,
                          compute_dtype=jnp.float32))
    assert out2.shape == (N, C, L2)
    err2 = float(jnp.max(jnp.abs(out2 - ref2)))
    assert err2 <= 2e-3 * scale2, (err2, scale2)

    print("KERNEL_OK")
</pallas_src>

<mosaic_0001>
module attributes {stable_mosaic.version = 11 : i64} {
  func.func @_moments_kernel(%arg0: i32, %arg1: i32, %arg2: i32, %arg3: i32, %arg4: memref<1x32x128xf32, #tpu.memory_space<vmem>>, %arg5: memref<1x1x32x1xf32, #tpu.memory_space<vmem>>, %arg6: memref<1x1x32x1xf32, #tpu.memory_space<vmem>>, %arg7: memref<1x1x32x32xf32, #tpu.memory_space<vmem>>) attributes {dimension_semantics = [#tpu.dimension_semantics<parallel>, #tpu.dimension_semantics<parallel>, #tpu.dimension_semantics<arbitrary>, #tpu.dimension_semantics<arbitrary>], iteration_bounds = array<i64: 2, 2, 1, 2>, scalar_prefetch = 0 : i64, scratch_operands = 0 : i64, tpu.core_type = #tpu.core_type<tc>, window_params = [{transform_indices = @transform_0, window_bounds = array<i64: 1, 32, 128>}, {transform_indices = @transform_1, window_bounds = array<i64: 1, 1, 32, 1>}, {transform_indices = @transform_2, window_bounds = array<i64: 1, 1, 32, 1>}, {transform_indices = @transform_3, window_bounds = array<i64: 1, 1, 32, 32>}]} {
    %c0_i32 = arith.constant 0 : i32
    %0 = arith.cmpi eq, %arg2, %c0_i32 : i32
    %c0_i32_0 = arith.constant 0 : i32
    %1 = arith.cmpi eq, %arg3, %c0_i32_0 : i32
    %2 = arith.andi %0, %1 : i1
    %3 = arith.extui %2 : i1 to i32
    %c0_i32_1 = arith.constant 0 : i32
    %4 = arith.cmpi ne, %3, %c0_i32_1 : i32
    scf.if %4 {
      %cst_31 = arith.constant 0.000000e+00 : f32
      %39 = vector.broadcast %cst_31 : f32 to vector<32x1xf32>
      %c0_32 = arith.constant 0 : index
      %c0_33 = arith.constant 0 : index
      %c0_34 = arith.constant 0 : index
      %c0_35 = arith.constant 0 : index
      %40 = vector.load %arg5[%c0_32, %c0_33, %c0_34, %c0_35] : memref<1x1x32x1xf32, #tpu.memory_space<vmem>>, vector<1x1x32x1xf32>
      %41 = vector.shape_cast %40 : vector<1x1x32x1xf32> to vector<32x1xf32>
      %42 = vector.shape_cast %39 : vector<32x1xf32> to vector<1x1x32x1xf32>
      tpu.vector_store %arg5[%c0_32, %c0_33, %c0_34, %c0_35], %42 {strides = array<i32>} : memref<1x1x32x1xf32, #tpu.memory_space<vmem>>, vector<1x1x32x1xf32>,
      %cst_36 = arith.constant 0.000000e+00 : f32
      %43 = vector.broadcast %cst_36 : f32 to vector<32x1xf32>
      %c0_37 = arith.constant 0 : index
      %c0_38 = arith.constant 0 : index
      %c0_39 = arith.constant 0 : index
      %c0_40 = arith.constant 0 : index
      %44 = vector.load %arg6[%c0_37, %c0_38, %c0_39, %c0_40] : memref<1x1x32x1xf32, #tpu.memory_space<vmem>>, vector<1x1x32x1xf32>
      %45 = vector.shape_cast %44 : vector<1x1x32x1xf32> to vector<32x1xf32>
      %46 = vector.shape_cast %43 : vector<32x1xf32> to vector<1x1x32x1xf32>
      tpu.vector_store %arg6[%c0_37, %c0_38, %c0_39, %c0_40], %46 {strides = array<i32>} : memref<1x1x32x1xf32, #tpu.memory_space<vmem>>, vector<1x1x32x1xf32>,
      %cst_41 = arith.constant 0.000000e+00 : f32
      %47 = vector.broadcast %cst_41 : f32 to vector<32x32xf32>
      %c0_42 = arith.constant 0 : index
      %c0_43 = arith.constant 0 : index
      %c0_44 = arith.constant 0 : index
      %c0_45 = arith.constant 0 : index
      %48 = vector.load %arg7[%c0_42, %c0_43, %c0_44, %c0_45] : memref<1x1x32x32xf32, #tpu.memory_space<vmem>>, vector<1x1x32x32xf32>
      %49 = vector.shape_cast %48 : vector<1x1x32x32xf32> to vector<32x32xf32>
      %50 = vector.shape_cast %47 : vector<32x32xf32> to vector<1x1x32x32xf32>
      tpu.vector_store %arg7[%c0_42, %c0_43, %c0_44, %c0_45], %50 {strides = array<i32>} : memref<1x1x32x32xf32, #tpu.memory_space<vmem>>, vector<1x1x32x32xf32>,
    } else {
    }
    %c0 = arith.constant 0 : index
    %c0_2 = arith.constant 0 : index
    %c0_3 = arith.constant 0 : index
    %5 = vector.load %arg4[%c0, %c0_2, %c0_3] : memref<1x32x128xf32, #tpu.memory_space<vmem>>, vector<1x32x128xf32>
    %6 = vector.shape_cast %5 : vector<1x32x128xf32> to vector<32x128xf32>
    %7 = tpu.iota {dimensions = array<i32: 0>} : vector<32x128xi32>
    %c32_i32 = arith.constant 32 : i32
    %8 = arith.muli %arg1, %c32_i32 : i32
    %9 = vector.broadcast %8 : i32 to vector<32x128xi32>
    %10 = arith.addi %7, %9 : vector<32x128xi32>
    %c40_i32 = arith.constant 40 : i32
    %11 = vector.broadcast %c40_i32 : i32 to vector<32x128xi32>
    %12 = arith.cmpi slt, %10, %11 : vector<32x128xi32>
    %cst = arith.constant 0.000000e+00 : f32
    %13 = vector.broadcast %cst : f32 to vector<32x128xf32>
    %14 = arith.select %12, %6, %13 : vector<32x128xi1>, vector<32x128xf32>
    %c0_4 = arith.constant 0 : index
    %c0_5 = arith.constant 0 : index
    %c0_6 = arith.constant 0 : index
    %c0_7 = arith.constant 0 : index
    %15 = vector.load %arg5[%c0_4, %c0_5, %c0_6, %c0_7] : memref<1x1x32x1xf32, #tpu.memory_space<vmem>>, vector<1x1x32x1xf32>
    %16 = vector.shape_cast %15 : vector<1x1x32x1xf32> to vector<32x1xf32>
    %cst_8 = arith.constant dense<0.000000e+00> : vector<32xf32>
    %17 = vector.multi_reduction <add>, %14, %cst_8 [1] : vector<32x128xf32> to vector<32xf32>
    %18 = vector.shape_cast %17 : vector<32xf32> to vector<32x1xf32>
    %19 = arith.addf %16, %18 : vector<32x1xf32>
    %c0_9 = arith.constant 0 : index
    %c0_10 = arith.constant 0 : index
    %c0_11 = arith.constant 0 : index
    %c0_12 = arith.constant 0 : index
    %20 = vector.load %arg5[%c0_9, %c0_10, %c0_11, %c0_12] : memref<1x1x32x1xf32, #tpu.memory_space<vmem>>, vector<1x1x32x1xf32>
    %21 = vector.shape_cast %20 : vector<1x1x32x1xf32> to vector<32x1xf32>
    %22 = vector.shape_cast %19 : vector<32x1xf32> to vector<1x1x32x1xf32>
    tpu.vector_store %arg5[%c0_9, %c0_10, %c0_11, %c0_12], %22 {strides = array<i32>} : memref<1x1x32x1xf32, #tpu.memory_space<vmem>>, vector<1x1x32x1xf32>,
    %c0_13 = arith.constant 0 : index
    %c0_14 = arith.constant 0 : index
    %c0_15 = arith.constant 0 : index
    %c0_16 = arith.constant 0 : index
    %23 = vector.load %arg6[%c0_13, %c0_14, %c0_15, %c0_16] : memref<1x1x32x1xf32, #tpu.memory_space<vmem>>, vector<1x1x32x1xf32>
    %24 = vector.shape_cast %23 : vector<1x1x32x1xf32> to vector<32x1xf32>
    %25 = arith.mulf %14, %14 : vector<32x128xf32>
    %cst_17 = arith.constant dense<0.000000e+00> : vector<32xf32>
    %26 = vector.multi_reduction <add>, %25, %cst_17 [1] : vector<32x128xf32> to vector<32xf32>
    %27 = vector.shape_cast %26 : vector<32xf32> to vector<32x1xf32>
    %28 = arith.addf %24, %27 : vector<32x1xf32>
    %c0_18 = arith.constant 0 : index
    %c0_19 = arith.constant 0 : index
    %c0_20 = arith.constant 0 : index
    %c0_21 = arith.constant 0 : index
    %29 = vector.load %arg6[%c0_18, %c0_19, %c0_20, %c0_21] : memref<1x1x32x1xf32, #tpu.memory_space<vmem>>, vector<1x1x32x1xf32>
    %30 = vector.shape_cast %29 : vector<1x1x32x1xf32> to vector<32x1xf32>
    %31 = vector.shape_cast %28 : vector<32x1xf32> to vector<1x1x32x1xf32>
    tpu.vector_store %arg6[%c0_18, %c0_19, %c0_20, %c0_21], %31 {strides = array<i32>} : memref<1x1x32x1xf32, #tpu.memory_space<vmem>>, vector<1x1x32x1xf32>,
    %c0_22 = arith.constant 0 : index
    %c0_23 = arith.constant 0 : index
    %c0_24 = arith.constant 0 : index
    %c0_25 = arith.constant 0 : index
    %32 = vector.load %arg7[%c0_22, %c0_23, %c0_24, %c0_25] : memref<1x1x32x32xf32, #tpu.memory_space<vmem>>, vector<1x1x32x32xf32>
    %33 = vector.shape_cast %32 : vector<1x1x32x32xf32> to vector<32x32xf32>
    %cst_26 = arith.constant dense<0.000000e+00> : vector<32x32xf32>
    %34 = tpu.matmul %14, %14, %cst_26 {dimension_numbers = #tpu.dot_dimension_numbers<[1], [1], [0], [0], [0, 0, 1, 0], [], []>} : vector<32x128xf32>, vector<32x128xf32>, vector<32x32xf32> -> vector<32x32xf32>
    %35 = arith.addf %33, %34 : vector<32x32xf32>
    %c0_27 = arith.constant 0 : index
    %c0_28 = arith.constant 0 : index
    %c0_29 = arith.constant 0 : index
    %c0_30 = arith.constant 0 : index
    %36 = vector.load %arg7[%c0_27, %c0_28, %c0_29, %c0_30] : memref<1x1x32x32xf32, #tpu.memory_space<vmem>>, vector<1x1x32x32xf32>
    %37 = vector.shape_cast %36 : vector<1x1x32x32xf32> to vector<32x32xf32>
    %38 = vector.shape_cast %35 : vector<32x32xf32> to vector<1x1x32x32xf32>
    tpu.vector_store %arg7[%c0_27, %c0_28, %c0_29, %c0_30], %38 {strides = array<i32>} : memref<1x1x32x32xf32, #tpu.memory_space<vmem>>, vector<1x1x32x32xf32>,
    return
  }
  func.func @transform_0(%arg0: i32, %arg1: i32, %arg2: i32, %arg3: i32) -> (i32, i32, i32) {
    %c1_i32 = arith.constant 1 : i32
    %0 = arith.muli %arg0, %c1_i32 : i32
    %1 = arith.addi %0, %arg2 : i32
    %c0_i32 = arith.constant 0 : i32
    return %1, %arg1, %arg3 : i32, i32, i32
  }
  func.func @transform_1(%arg0: i32, %arg1: i32, %arg2: i32, %arg3: i32) -> (i32, i32, i32, i32) {
    %c0_i32 = arith.constant 0 : i32
    %c0_i32_0 = arith.constant 0 : i32
    %c0_i32_1 = arith.constant 0 : i32
    return %arg1, %arg0, %c0_i32, %c0_i32_0 : i32, i32, i32, i32
  }
  func.func @transform_2(%arg0: i32, %arg1: i32, %arg2: i32, %arg3: i32) -> (i32, i32, i32, i32) {
    %c0_i32 = arith.constant 0 : i32
    %c0_i32_0 = arith.constant 0 : i32
    %c0_i32_1 = arith.constant 0 : i32
    return %arg1, %arg0, %c0_i32, %c0_i32_0 : i32, i32, i32, i32
  }
  func.func @transform_3(%arg0: i32, %arg1: i32, %arg2: i32, %arg3: i32) -> (i32, i32, i32, i32) {
    %c0_i32 = arith.constant 0 : i32
    %c0_i32_0 = arith.constant 0 : i32
    %c0_i32_1 = arith.constant 0 : i32
    return %arg1, %arg0, %c0_i32, %c0_i32_0 : i32, i32, i32, i32
  }
}

</mosaic_0001>

<llo_original>
// kernel: tpu_custom_call.1
$region0: #{tpu_custom_call.1}
  #allocation0 [shape = 'u32[]', space=smem, size = 0x4, offset = 0x4, fixed_abs, tag = 'smem constant byte address 0x4 - core index']
  #allocation1 [shape = 'u32[144,128]{1,0:T(1,128)}', space=vmem, size = 0x12000, scoped, tag = 'internal scratch']
  %s0 = inlined_call_operand.hbm [shape: f32[2,40,256], index: 0, kind: input, shape index: {}]
  %s1 = inlined_call_operand.vmem [shape: f32[2,2,32,1], index: 1, kind: output, shape index: {0}]
  %s2 = inlined_call_operand.vmem [shape: f32[2,2,32,1], index: 2, kind: output, shape index: {1}]
  %s3 = inlined_call_operand.hbm [shape: f32[2,2,32,32], index: 3, kind: output, shape index: {2}]
  %4 = xla_tuple %s1, %s2, %s3
  %s5 = sld [smem:[#allocation0]]
  $region61: #{tpu_custom_call.1} parent=0
    _
  %s7 = ssub.s32 1, %s5
  %s8 = scalar_select 0, %s7, %s5
  $region1: #{tpu_custom_call.1} parent=0
    #allocation2 [shape = 'u8[32768]{0}', space=vmem, size = 0x8000, scoped, tag = 'input window, operand 0']
    #allocation3 [shape = 's32[2]{0}', space=sflag, size = 0x8, scoped, tag = 'scoped memory for tpu_custom_call.1']
    #allocation4 [shape = 's32[2]{0}', space=sflag, size = 0x8, scoped, tag = 'scoped memory for tpu_custom_call.1']
    #allocation5 [shape = 'u8[32768]{0}', space=vmem, size = 0x8000, scoped, tag = 'output window, operand 2']
    %9 = vsyncpa [#allocation3], 0
    %s10 = scalar_lea.sflag [#allocation3], 1
    %11 = vsyncpa %s10, 0
    %12 = vsyncpa [#allocation4], 0
    %s13 = scalar_lea.sflag [#allocation4], 1
    %14 = vsyncpa %s13, 0
    loop: start=0, step=1, limit=10
    $region2: #{tpu_custom_call.1} parent=1 // loop_pre_header
      _
    $region3: #{tpu_custom_call.1} parent=1 // loop_header
      %s16 = sphi 0, %s20
      %p17 = scmp.ge.s32.totalorder %s16, 10
      %s23 = sphi 0, %s49
      %s24 = sphi 0, %s45
      %s25 = sphi 0, %s41
      %s26 = sphi 0, %s37
      %s27 = sphi 0, %s23
      %s28 = sphi 0, %s24
      %s29 = sphi 0, %s25
      %s30 = sphi 0, %s26
      %s31 = sphi 0, %s27
      %s32 = sphi 0, %s28
      %s33 = sphi 0, %s29
      %s34 = sphi 0, %s30
      %s58 = sphi 0, %s60
      %s61 = sphi 0, %s58
      %s62 = sphi 0, %s61
      %s78 = sphi 0, %s62
      %s86 = sphi 0, %s88
      %s89 = sphi 0, %s86
      %s90 = sphi 0, %s89
      %s106 = sphi 0, %s90
      %s114 = sphi 0, %s116
      %s117 = sphi 0, %s114
      %s118 = sphi 0, %s117
      %s134 = sphi 0, %s118
      %s142 = sphi 0, %s144
      %s145 = sphi 0, %s142
      %s146 = sphi 0, %s145
      %s162 = sphi 0, %s146
    $region4: #{tpu_custom_call.1} parent=1 // loop_header_branch
      %19 = sbr.rel (%p17) target = $region8
    $region5: #{tpu_custom_call.1} parent=1 // loop_body
      %s21 = ssub.s32 %s16, 1
      %s22 = ssub.s32 %s16, 2
      %s35 = sadd.s32 1, %s26
      %p36 = scmp.ge.s32.totalorder %s35, 2
      %s37 = scalar_select %p36, 0, %s35
      %s38 = sadd.s32 1, %s25
      %s39 = scalar_select %p36, %s38, %s25
      %p40 = scmp.ge.s32.totalorder %s39, 1
      %s41 = scalar_select %p40, 0, %s39
      %s42 = sadd.s32 1, %s24
      %s43 = scalar_select %p40, %s42, %s24
      %p44 = scmp.ge.s32.totalorder %s43, 2
      %s45 = scalar_select %p44, 0, %s43
      %s46 = sadd.s32 1, %s23
      %s47 = scalar_select %p44, %s46, %s23
      %p48 = scmp.ge.s32.totalorder %s47, 2
      %s49 = scalar_select %p48, 0, %s47
      %s50 = sadd.s32 %s23, %s25
      %s51 = sadd.s32 %s49, %s41
      %s52 = ssub.s32 %s50, %s51
      %s53 = ssub.s32 %s24, %s45
      %s54 = sor.u32 %s52, %s53
      %s55 = ssub.s32 %s26, %s37
      %s56 = sor.u32 %s54, %s55
      %p57 = scmp.eq.s32.totalorder %s56, 0
      %s59 = sadd.s32 %s58, 1
      %s60 = scalar_select %p57, %s58, %s59
      %p63 = pneg %p57
      %p64 = scmp.eq.s32.totalorder %s16, 7
      %p65 = por %p63, %p64
      %p66 = scmp.ne.s32.totalorder %s58, %s61
      %p67 = scmp.eq.s32.totalorder %s16, 0
      %p68 = por %p66, %p67
      %p69 = scmp.ne.s32.totalorder %s58, %s61
      %p70 = scmp.eq.s32.totalorder %s21, 7
      %p71 = por %p69, %p70
      %p72 = scmp.ne.s32.totalorder %s61, %s62
      %p73 = scmp.eq.s32.totalorder %s21, 0
      %p74 = por %p72, %p73
      %p75 = scmp.ne.s32.totalorder %s61, %s62
      %p76 = scmp.eq.s32.totalorder %s22, 7
      %p77 = por %p75, %p76
      %p79 = scmp.ne.s32.totalorder %s62, %s78
      %p80 = scmp.eq.s32.totalorder %s22, 0
      %p81 = por %p79, %p80
      %s82 = ssub.s32 %s24, %s45
      %s83 = ssub.s32 %s23, %s49
      %s84 = sor.u32 %s82, %s83
      %p85 = scmp.eq.s32.totalorder %s84, 0
      %s87 = sadd.s32 %s86, 1
      %s88 = scalar_select %p85, %s86, %s87
      %p91 = pneg %p85
      %p92 = scmp.eq.s32.totalorder %s16, 7
      %p93 = por %p91, %p92
      %p94 = scmp.ne.s32.totalorder %s86, %s89
      %p95 = scmp.eq.s32.totalorder %s16, 0
      %p96 = por %p94, %p95
      %p97 = scmp.ne.s32.totalorder %s86, %s89
      %p98 = scmp.eq.s32.totalorder %s21, 7
      %p99 = por %p97, %p98
      %p100 = scmp.ne.s32.totalorder %s89, %s90
      %p101 = scmp.eq.s32.totalorder %s21, 0
      %p102 = por %p100, %p101
      %p103 = scmp.ne.s32.totalorder %s89, %s90
      %p104 = scmp.eq.s32.totalorder %s22, 7
      %p105 = por %p103, %p104
      %p107 = scmp.ne.s32.totalorder %s90, %s106
      %p108 = scmp.eq.s32.totalorder %s22, 0
      %p109 = por %p107, %p108
      %s110 = ssub.s32 %s24, %s45
      %s111 = ssub.s32 %s23, %s49
      %s112 = sor.u32 %s110, %s111
      %p113 = scmp.eq.s32.totalorder %s112, 0
      %s115 = sadd.s32 %s114, 1
      %s116 = scalar_select %p113, %s114, %s115
      %p119 = pneg %p113
      %p120 = scmp.eq.s32.totalorder %s16, 7
      %p121 = por %p119, %p120
      %p122 = scmp.ne.s32.totalorder %s114, %s117
      %p123 = scmp.eq.s32.totalorder %s16, 0
      %p124 = por %p122, %p123
      %p125 = scmp.ne.s32.totalorder %s114, %s117
      %p126 = scmp.eq.s32.totalorder %s21, 7
      %p127 = por %p125, %p126
      %p128 = scmp.ne.s32.totalorder %s117, %s118
      %p129 = scmp.eq.s32.totalorder %s21, 0
      %p130 = por %p128, %p129
      %p131 = scmp.ne.s32.totalorder %s117, %s118
      %p132 = scmp.eq.s32.totalorder %s22, 7
      %p133 = por %p131, %p132
      %p135 = scmp.ne.s32.totalorder %s118, %s134
      %p136 = scmp.eq.s32.totalorder %s22, 0
      %p137 = por %p135, %p136
      %s138 = ssub.s32 %s24, %s45
      %s139 = ssub.s32 %s23, %s49
      %s140 = sor.u32 %s138, %s139
      %p141 = scmp.eq.s32.totalorder %s140, 0
      %s143 = sadd.s32 %s142, 1
      %s144 = scalar_select %p141, %s142, %s143
      %p147 = pneg %p141
      %p148 = scmp.eq.s32.totalorder %s16, 7
      %p149 = por %p147, %p148
      %p150 = scmp.ne.s32.totalorder %s142, %s145
      %p151 = scmp.eq.s32.totalorder %s16, 0
      %p152 = por %p150, %p151
      %p153 = scmp.ne.s32.totalorder %s142, %s145
      %p154 = scmp.eq.s32.totalorder %s21, 7
      %p155 = por %p153, %p154
      %p156 = scmp.ne.s32.totalorder %s145, %s146
      %p157 = scmp.eq.s32.totalorder %s21, 0
      %p158 = por %p156, %p157
      %p159 = scmp.ne.s32.totalorder %s145, %s146
      %p160 = scmp.eq.s32.totalorder %s22, 7
      %p161 = por %p159, %p160
      %p163 = scmp.ne.s32.totalorder %s146, %s162
      %p164 = scmp.eq.s32.totalorder %s22, 0
      %p165 = por %p163, %p164
      %p166 = scmp.le.s32.totalorder 1, %s16
      %p167 = scmp.lt.s32.totalorder %s16, 9
      %p168 = pnand %p166, %p167
      %p169 = pneg %p168
      // Predicated region
      $region9: #{tpu_custom_call.1} parent=5 // pred_check
        _
      $region10: #{tpu_custom_call.1} parent=5 // pred_check_branch
        %171 = sbr.rel (%p168) target = $region12
      $region11: #{tpu_custom_call.1} parent=5 // pred_region
        %s172 = ssub.s32 %s16, 1
      $region12: #{tpu_custom_call.1} parent=5 // pred_fallthru
        _
      %p173 = scmp.lt.s32.totalorder %s16, 8
      // Predicated region
      $region13: #{tpu_custom_call.1} parent=5 // pred_check
        %p174 = pneg %p173
      $region14: #{tpu_custom_call.1} parent=5 // pred_check_branch
        %176 = sbr.rel (%p174) target = $region16
      $region15: #{tpu_custom_call.1} parent=5 // pred_region
        // Predicated region
        $region17: #{tpu_custom_call.1} parent=15 // pred_check
          %p177 = pneg %p68
        $region18: #{tpu_custom_call.1} parent=15 // pred_check_branch
          %179 = sbr.rel (%p177) target = $region20
        $region19: #{tpu_custom_call.1} parent=15 // pred_region
          %s180 = sand.u32 %s58, 1
          %s181 = scalar_lea.sflag [#allocation3], %s180
          %s182 = sand.u32 %s58, 1
          %s183 = smul.addr %s182, 32
          %s184 = scalar_lea.vmem [#allocation2], %s183
          %s185 = sadd.s32 %s23, %s25
          %s186 = smul.u32 4, %s24
          %s187 = ssub.s32 5, %s186
          %p188 = scmp.lt.s32.totalorder %s187, 4
          %s189 = scalar_select %p188, %s187, 4
          %s190 = smul.u32 128, %s189
          %s192 = ssub.s32 512, %s190
          %193 = vsyncadd %s181, %s192
          %p194 = scmp.ne.s32.totalorder 0, %s190
          %s195 = smul.addr %s186, 2
          %s196 = sadd.s32 %s26, %s195
          %s197 = smul.addr %s185, 10
          %s198 = sadd.s32 %s196, %s197
          %s199 = smul.addr %s198, 128
          %s200 = scalar_lea.hbm %s0, %s199
          %s201 = smul.u32 8, %s189
          %s202 = sshll.u32 %s184, 4
          %s203 = int_to_ptr.vmem [resolvable:$true] %s202
          %s204 = sshll.u32 %s201, 4
          %208 = dma.hbm_to_vmem [thread:$0]  (%p194), %s200, %s204, %s203, %s181, 256, 128, 8
        $region20: #{tpu_custom_call.1} parent=15 // pred_fallthru
          _
      $region16: #{tpu_custom_call.1} parent=5 // pred_fallthru
        _
      %p209 = scmp.le.s32.totalorder 1, %s16
      %p210 = scmp.lt.s32.totalorder %s16, 9
      %p211 = pnand %p209, %p210
      %p212 = pneg %p211
      // Predicated region
      $region21: #{tpu_custom_call.1} parent=5 // pred_check
        _
      $region22: #{tpu_custom_call.1} parent=5 // pred_check_branch
        %214 = sbr.rel (%p211) target = $region24
      $region23: #{tpu_custom_call.1} parent=5 // pred_region
        %s215 = ssub.s32 %s16, 1
        %s216 = sand.u32 %s61, 1
        %s217 = scalar_lea.sflag [#allocation3], %s216
        %s218 = sand.u32 %s61, 1
        %s219 = smul.addr %s218, 32
        %s220 = scalar_lea.vmem [#allocation2], %s219
        // Predicated region
        $region25: #{tpu_custom_call.1} parent=23 // pred_check
          %p221 = pneg %p74
        $region26: #{tpu_custom_call.1} parent=23 // pred_check_branch
          %223 = sbr.rel (%p221) target = $region28
        $region27: #{tpu_custom_call.1} parent=23 // pred_region
          %224 = dma.done %s217, 512
        $region28: #{tpu_custom_call.1} parent=23 // pred_fallthru
          _
        %s225 = sand.u32 %s61, 1
        %s226 = scalar_lea.sflag [#allocation3], %s225
        %s227 = sand.u32 %s61, 1
        %s228 = smul.addr %s227, 32
        %s229 = scalar_lea.vmem [#allocation2], %s228
        %p230 = pneg %p74
        %p231 = pneg %p71
        %p232 = pneg %p102
        %p233 = pneg %p99
        %p234 = scmp.lt.s32.totalorder %s28, 1
        %s235 = scalar_select %p234, %s28, 1
        %p236 = scmp.lt.s32.totalorder %s27, 1
        %s237 = scalar_select %p236, %s27, 1
        %s238 = smul.addr %s237, 4
        %s239 = smul.addr %s235, 8
        %s240 = sadd.s32 %s238, %s239
        %s241 = smul.addr %s240, 8
        %s242 = scalar_lea.vmem %s1, %s241
        %p243 = pneg %p130
        %p244 = pneg %p127
        %p245 = scmp.lt.s32.totalorder %s28, 1
        %s246 = scalar_select %p245, %s28, 1
        %p247 = scmp.lt.s32.totalorder %s27, 1
        %s248 = scalar_select %p247, %s27, 1
        %s249 = smul.addr %s248, 4
        %s250 = smul.addr %s246, 8
        %s251 = sadd.s32 %s249, %s250
        %s252 = smul.addr %s251, 8
        %s253 = scalar_lea.vmem %s2, %s252
        %p254 = pneg %p158
        %p255 = pneg %p155
        %s256 = sand.u32 %s145, 1
        %s257 = scalar_lea.sflag [#allocation4], %s256
        %s258 = sand.u32 %s145, 1
        %s259 = smul.addr %s258, 32
        %s260 = scalar_lea.vmem [#allocation5], %s259
        %s261 = sadd.s32 %s27, %s29
        %s262 = smul.u32 4, %s28
        %s263 = ssub.s32 5, %s262
        %p264 = scmp.lt.s32.totalorder %s263, 4
        %s265 = scalar_select %p264, %s263, 4
        %s266 = smul.u32 128, %s265
        %p267 = scmp.lt.s32.totalorder %s28, 1
        %s268 = scalar_select %p267, %s28, 1
        %p269 = scmp.lt.s32.totalorder %s27, 1
        %s270 = scalar_select %p269, %s27, 1
        %s271 = smul.addr %s270, 4
        %s272 = smul.addr %s268, 8
        %s273 = sadd.s32 %s271, %s272
        %s274 = smul.addr %s273, 8
        %s275 = scalar_lea.vmem %s1, %s274
        %p276 = scmp.lt.s32.totalorder %s28, 1
        %s277 = scalar_select %p276, %s28, 1
        %p278 = scmp.lt.s32.totalorder %s27, 1
        %s279 = scalar_select %p278, %s27, 1
        %s280 = smul.addr %s279, 4
        %s281 = smul.addr %s277, 8
        %s282 = sadd.s32 %s280, %s281
        %s283 = smul.addr %s282, 8
        %s284 = scalar_lea.vmem %s2, %s283
        %p285 = scmp.eq.s32.totalorder %s29, 0
        %p286 = scmp.eq.s32.totalorder %s30, 0
        %p287 = pnand %p285, %p286
        %p288 = pneg %p287
        // Predicated region
        $region29: #{tpu_custom_call.1} parent=23 // pred_check
          _
        $region30: #{tpu_custom_call.1} parent=23 // pred_check_branch
          %290 = sbr.rel (%p287) target = $region32
        $region31: #{tpu_custom_call.1} parent=23 // pred_region
          %vm291 = vcmask 7168
          %292 = vst.msk [vmem:[%s275] sm:$0xff] %vm291, 0.0
          %293 = vst.msk [vmem:[%s275 + $0x8] sm:$0xff] %vm291, 0.0
          %294 = vst.msk [vmem:[%s275 + $0x10] sm:$0xff] %vm291, 0.0
          %295 = vst.msk [vmem:[%s275 + $0x18] sm:$0xff] %vm291, 0.0
          %296 = vst.msk [vmem:[%s284] sm:$0xff] %vm291, 0.0
          %297 = vst.msk [vmem:[%s284 + $0x8] sm:$0xff] %vm291, 0.0
          %298 = vst.msk [vmem:[%s284 + $0x10] sm:$0xff] %vm291, 0.0
          %299 = vst.msk [vmem:[%s284 + $0x18] sm:$0xff] %vm291, 0.0
          %vm300 = vcmask 261120
          %301 = vst.msk [vmem:[%s260] sm:$0xff] %vm300, 0.0
          %302 = vst.msk [vmem:[%s260 + $0x8] sm:$0xff] %vm300, 0.0
          %303 = vst.msk [vmem:[%s260 + $0x10] sm:$0xff] %vm300, 0.0
          %304 = vst.msk [vmem:[%s260 + $0x18] sm:$0xff] %vm300, 0.0
        $region32: #{tpu_custom_call.1} parent=23 // pred_fallthru
          _
        %v305 = vld [vmem:[%s220] sm:$0xff]
        %v306 = vld [vmem:[%s220 + $0x8] sm:$0xff]
        %v307 = vld [vmem:[%s220 + $0x10] sm:$0xff]
        %v308 = vld [vmem:[%s220 + $0x18] sm:$0xff]
        %v309 = vlaneseq
        %v310 = vshrl.u32 %v309, 7
        %v311 = vadd.s32 %v310, 8
        %v312 = vadd.s32 %v310, 16
        %v313 = vadd.s32 %v310, 24
        %s314 = smul.u32 %s28, 32
        %v315 = vstv %s314
        %v316 = vadd.s32 %v310, %v315
        %v317 = vadd.s32 %v311, %v315
        %v318 = vadd.s32 %v312, %v315
        %v319 = vadd.s32 %v313, %v315
        %vm320 = vcmp.lt.s32.totalorder %v316, 40
        %vm321 = vcmp.lt.s32.totalorder %v317, 40
        %vm322 = vcmp.lt.s32.totalorder %v318, 40
        %vm323 = vcmp.lt.s32.totalorder %v319, 40
        %v324 = vsel %vm320, %v305, 0.0
        %v325 = vsel %vm321, %v306, 0.0
        %v326 = vsel %vm322, %v307, 0.0
        %v327 = vsel %vm323, %v308, 0.0
        %v328 = vld [vmem:[%s275] sm:$0xff]
        %v329 = vld [vmem:[%s275 + $0x8] sm:$0xff]
        %v330 = vld [vmem:[%s275 + $0x10] sm:$0xff]
        %v331 = vld [vmem:[%s275 + $0x18] sm:$0xff]
        %332 = vadd.xlane.f32.xlu0 %v324
        %v333 = vpop.xlane.xlu0 %332
        %334 = vadd.xlane.f32.xlu0 %v325
        %v335 = vpop.xlane.xlu0 %334
        %336 = vadd.xlane.f32.xlu0 %v326
        %v337 = vpop.xlane.xlu0 %336
        %338 = vadd.xlane.f32.xlu0 %v327
        %v339 = vpop.xlane.xlu0 %338
        %v340 = vadd.f32 %v328, %v333
        %v341 = vadd.f32 %v329, %v335
        %v342 = vadd.f32 %v330, %v337
        %v343 = vadd.f32 %v331, %v339
        %vm344 = vcmask 7168
        %345 = vst.msk [vmem:[%s275] sm:$0xff] %vm344, %v340
        %346 = vst.msk [vmem:[%s275 + $0x8] sm:$0xff] %vm344, %v341
        %347 = vst.msk [vmem:[%s275 + $0x10] sm:$0xff] %vm344, %v342
        %348 = vst.msk [vmem:[%s275 + $0x18] sm:$0xff] %vm344, %v343
        %v349 = vld [vmem:[%s284] sm:$0xff]
        %v350 = vld [vmem:[%s284 + $0x8] sm:$0xff]
        %v351 = vld [vmem:[%s284 + $0x10] sm:$0xff]
        %v352 = vld [vmem:[%s284 + $0x18] sm:$0xff]
        %v353 = vmul.f32 %v324, %v324
        %v354 = vmul.f32 %v325, %v325
        %v355 = vmul.f32 %v326, %v326
        %v356 = vmul.f32 %v327, %v327
        %357 = vadd.xlane.f32.xlu0 %v353
        %v358 = vpop.xlane.xlu0 %357
        %359 = vadd.xlane.f32.xlu0 %v354
        %v360 = vpop.xlane.xlu0 %359
        %361 = vadd.xlane.f32.xlu0 %v355
        %v362 = vpop.xlane.xlu0 %361
        %363 = vadd.xlane.f32.xlu0 %v356
        %v364 = vpop.xlane.xlu0 %363
        %v365 = vadd.f32 %v349, %v358
        %v366 = vadd.f32 %v350, %v360
        %v367 = vadd.f32 %v351, %v362
        %v368 = vadd.f32 %v352, %v364
        %369 = vst.msk [vmem:[%s284] sm:$0xff] %vm344, %v365
        %370 = vst.msk [vmem:[%s284 + $0x8] sm:$0xff] %vm344, %v366
        %371 = vst.msk [vmem:[%s284 + $0x10] sm:$0xff] %vm344, %v367
        %372 = vst.msk [vmem:[%s284 + $0x18] sm:$0xff] %vm344, %v368
        %v373 = vld [vmem:[%s260] sm:$0xff]
        %v374 = vld [vmem:[%s260 + $0x8] sm:$0xff]
        %v375 = vld [vmem:[%s260 + $0x10] sm:$0xff]
        %v376 = vld [vmem:[%s260 + $0x18] sm:$0xff]
        %377 = vmatprep.subr.mxu0 0.0
        %378 = vmatpush1.xpose.msra.mxu0 0.0
        %379 = vmatprep.subr.mxu0 0.0
        %380 = vmatpush1.xpose.msra.mxu0 0.0
        %381 = vmatprep.subr.mxu0 0.0
        %382 = vmatpush1.xpose.msra.mxu0 0.0
        %383 = vmatprep.subr.mxu0 0.0
        %384 = vmatpush1.xpose.msra.mxu0 0.0
        %385 = vmatprep.subr.mxu0 0.0
        %386 = vmatpush1.xpose.msra.mxu0 0.0
        %387 = vmatprep.subr.mxu0 0.0
        %388 = vmatpush1.xpose.msra.mxu0 0.0
        %389 = vmatprep.subr.mxu0 0.0
        %390 = vmatpush1.xpose.msra.mxu0 0.0
        %391 = vmatprep.subr.mxu0 0.0
        %392 = vmatpush1.xpose.msra.mxu0 0.0
        %393 = vmatprep.subr.mxu0 0.0
        %394 = vmatpush1.xpose.msra.mxu0 0.0
        %395 = vmatprep.subr.mxu0 0.0
        %396 = vmatpush1.xpose.msra.mxu0 0.0
        %397 = vmatprep.subr.mxu0 0.0
        %398 = vmatpush1.xpose.msra.mxu0 0.0
        %399 = vmatprep.subr.mxu0 0.0
        %400 = vmatpush1.xpose.msra.mxu0 0.0
        %401 = vmatprep.subr.mxu0 0.0
        %402 = vmatpush1.xpose.msra.mxu0 %v327
        %403 = vmatprep.subr.mxu0 0.0
        %404 = vmatpush1.xpose.msra.mxu0 %v326
        %405 = vmatprep.subr.mxu0 0.0
        %406 = vmatpush1.xpose.msra.mxu0 %v325
        %407 = vmatprep.subr.mxu0 0.0
        %408 = vmatpush1.xpose.msra.mxu0 %v324
        %409 = vmatprep.subr.mxu0 0.0
        %410 = vmatpush2.xpose.msra.mxu0 0.0
        %411 = vmatprep.subr.mxu0 0.0
        %412 = vmatpush2.xpose.msra.mxu0 0.0
        %413 = vmatprep.subr.mxu0 0.0
        %414 = vmatpush2.xpose.msra.mxu0 0.0
        %415 = vmatprep.subr.mxu0 0.0
        %416 = vmatpush2.xpose.msra.mxu0 0.0
        %417 = vmatprep.subr.mxu0 0.0
        %418 = vmatpush2.xpose.msra.mxu0 0.0
        %419 = vmatprep.subr.mxu0 0.0
        %420 = vmatpush2.xpose.msra.mxu0 0.0
        %421 = vmatprep.subr.mxu0 0.0
        %422 = vmatpush2.xpose.msra.mxu0 0.0
        %423 = vmatprep.subr.mxu0 0.0
        %424 = vmatpush2.xpose.msra.mxu0 0.0
        %425 = vmatprep.subr.mxu0 0.0
        %426 = vmatpush2.xpose.msra.mxu0 0.0
        %427 = vmatprep.subr.mxu0 0.0
        %428 = vmatpush2.xpose.msra.mxu0 0.0
        %429 = vmatprep.subr.mxu0 0.0
        %430 = vmatpush2.xpose.msra.mxu0 0.0
        %431 = vmatprep.subr.mxu0 0.0
        %432 = vmatpush2.xpose.msra.mxu0 0.0
        %433 = vmatprep.subr.mxu0 0.0
        %434 = vmatpush2.xpose.msra.mxu0 0.0
        %435 = vmatprep.subr.mxu0 0.0
        %436 = vmatpush2.xpose.msra.mxu0 0.0
        %437 = vmatprep.subr.mxu0 0.0
        %438 = vmatpush2.xpose.msra.mxu0 0.0
        %439 = vmatprep.subr.mxu0 0.0
        %440 = vmatpush2.xpose.msra.mxu0 0.0
        %441 = vmatprep.mubr.f32.mxu0 0.0
        %442 = vmatmul.mubr.f32.gmra.mxu0 %v324
        %v443 = vpop.f32.mrf.mxu0
        %v444 = vadd.f32 0.0, %v443
        %v445 = vpop.f32.mrf.mxu0
        %446 = vmatprep.mubr.f32.mxu0 0.0
        %447 = vmatmul.mubr.f32.gmra.mxu0 %v325
        %v448 = vpop.f32.mrf.mxu0
        %v449 = vadd.f32 0.0, %v448
        %v450 = vpop.f32.mrf.mxu0
        %451 = vmatprep.mubr.f32.mxu0 0.0
        %452 = vmatmul.mubr.f32.gmra.mxu0 %v326
        %v453 = vpop.f32.mrf.mxu0
        %v454 = vadd.f32 0.0, %v453
        %v455 = vpop.f32.mrf.mxu0
        %456 = vmatprep.mubr.f32.mxu0 0.0
        %457 = vmatmul.mubr.f32.gmra.mxu0 %v327
        %v458 = vpop.f32.mrf.mxu0
        %v459 = vadd.f32 0.0, %v458
        %v460 = vpop.f32.mrf.mxu0
        %461 = vdwg.mxu0
        %v462 = vadd.f32 %v373, %v444
        %v463 = vadd.f32 %v374, %v449
        %v464 = vadd.f32 %v375, %v454
        %v465 = vadd.f32 %v376, %v459
        %vm466 = vcmask 261120
        %467 = vst.msk [vmem:[%s260] sm:$0xff] %vm466, %v462
        %468 = vst.msk [vmem:[%s260 + $0x8] sm:$0xff] %vm466, %v463
        %469 = vst.msk [vmem:[%s260 + $0x10] sm:$0xff] %vm466, %v464
        %470 = vst.msk [vmem:[%s260 + $0x18] sm:$0xff] %vm466, %v465
        %p471 = scmp.lt.s32.totalorder %s28, 1
        %s472 = scalar_select %p471, %s28, 1
        %p473 = scmp.lt.s32.totalorder %s27, 1
        %s474 = scalar_select %p473, %s27, 1
        %s475 = smul.addr %s474, 4
        %s476 = smul.addr %s472, 8
        %s477 = sadd.s32 %s475, %s476
        %s478 = smul.addr %s477, 8
        %s479 = scalar_lea.vmem %s1, %s478
        %p480 = scmp.lt.s32.totalorder %s28, 1
        %s481 = scalar_select %p480, %s28, 1
        %p482 = scmp.lt.s32.totalorder %s27, 1
        %s483 = scalar_select %p482, %s27, 1
        %s484 = smul.addr %s483, 4
        %s485 = smul.addr %s481, 8
        %s486 = sadd.s32 %s484, %s485
        %s487 = smul.addr %s486, 8
        %s488 = scalar_lea.vmem %s2, %s487
        %s489 = sand.u32 %s145, 1
        %s490 = scalar_lea.sflag [#allocation4], %s489
        %s491 = sand.u32 %s145, 1
        %s492 = smul.addr %s491, 32
        %s493 = scalar_lea.vmem [#allocation5], %s492
        // Predicated region
        $region33: #{tpu_custom_call.1} parent=23 // pred_check
          %p494 = pneg %p99
        $region34: #{tpu_custom_call.1} parent=23 // pred_check_branch
          %496 = sbr.rel (%p494) target = $region36
        $region35: #{tpu_custom_call.1} parent=23 // pred_region
          _
        $region36: #{tpu_custom_call.1} parent=23 // pred_fallthru
          _
        // Predicated region
        $region37: #{tpu_custom_call.1} parent=23 // pred_check
          %p497 = pneg %p127
        $region38: #{tpu_custom_call.1} parent=23 // pred_check_branch
          %499 = sbr.rel (%p497) target = $region40
        $region39: #{tpu_custom_call.1} parent=23 // pred_region
          _
        $region40: #{tpu_custom_call.1} parent=23 // pred_fallthru
          _
        // Predicated region
        $region41: #{tpu_custom_call.1} parent=23 // pred_check
          %p500 = pneg %p155
        $region42: #{tpu_custom_call.1} parent=23 // pred_check_branch
          %502 = sbr.rel (%p500) target = $region44
        $region43: #{tpu_custom_call.1} parent=23 // pred_region
          %s504 = ssub.s32 512, 512
          %505 = vsyncadd %s490, %s504
          %s506 = smul.addr %s27, 4
          %s507 = smul.addr %s28, 8
          %s508 = sadd.s32 %s506, %s507
          %s509 = smul.addr %s508, 128
          %s510 = scalar_lea.hbm %s3, %s509
          %s511 = sshll.u32 %s493, 4
          %s512 = int_to_ptr.vmem [resolvable:$true] %s511
          %517 = dma.vmem_to_hbm [thread:$0]  %s512, 512, %s510, %s490, 128, 128, 8
        $region44: #{tpu_custom_call.1} parent=23 // pred_fallthru
          _
      $region24: #{tpu_custom_call.1} parent=5 // pred_fallthru
        _
      %p518 = scmp.le.s32.totalorder 2, %s16
      // Predicated region
      $region45: #{tpu_custom_call.1} parent=5 // pred_check
        %p519 = pneg %p518
      $region46: #{tpu_custom_call.1} parent=5 // pred_check_branch
        %521 = sbr.rel (%p519) target = $region48
      $region47: #{tpu_custom_call.1} parent=5 // pred_region
        %s522 = ssub.s32 %s16, 2
        // Predicated region
        $region49: #{tpu_custom_call.1} parent=47 // pred_check
          %p523 = pneg %p105
        $region50: #{tpu_custom_call.1} parent=47 // pred_check_branch
          %525 = sbr.rel (%p523) target = $region52
        $region51: #{tpu_custom_call.1} parent=47 // pred_region
          %p526 = scmp.lt.s32.totalorder %s32, 1
          %s527 = scalar_select %p526, %s32, 1
          %p528 = scmp.lt.s32.totalorder %s31, 1
          %s529 = scalar_select %p528, %s31, 1
          %s530 = smul.addr %s529, 4
          %s531 = smul.addr %s527, 8
          %s532 = sadd.s32 %s530, %s531
          %s533 = smul.addr %s532, 8
          %s534 = scalar_lea.vmem %s1, %s533
        $region52: #{tpu_custom_call.1} parent=47 // pred_fallthru
          _
        // Predicated region
        $region53: #{tpu_custom_call.1} parent=47 // pred_check
          %p535 = pneg %p133
        $region54: #{tpu_custom_call.1} parent=47 // pred_check_branch
          %537 = sbr.rel (%p535) target = $region56
        $region55: #{tpu_custom_call.1} parent=47 // pred_region
          %p538 = scmp.lt.s32.totalorder %s32, 1
          %s539 = scalar_select %p538, %s32, 1
          %p540 = scmp.lt.s32.totalorder %s31, 1
          %s541 = scalar_select %p540, %s31, 1
          %s542 = smul.addr %s541, 4
          %s543 = smul.addr %s539, 8
          %s544 = sadd.s32 %s542, %s543
          %s545 = smul.addr %s544, 8
          %s546 = scalar_lea.vmem %s2, %s545
        $region56: #{tpu_custom_call.1} parent=47 // pred_fallthru
          _
        // Predicated region
        $region57: #{tpu_custom_call.1} parent=47 // pred_check
          %p547 = pneg %p161
        $region58: #{tpu_custom_call.1} parent=47 // pred_check_branch
          %549 = sbr.rel (%p547) target = $region60
        $region59: #{tpu_custom_call.1} parent=47 // pred_region
          %s550 = sand.u32 %s146, 1
          %s551 = scalar_lea.sflag [#allocation4], %s550
          %s552 = sand.u32 %s146, 1
          %s553 = smul.addr %s552, 32
          %s554 = scalar_lea.vmem [#allocation5], %s553
          %555 = dma.done %s551, 512
        $region60: #{tpu_custom_call.1} parent=47 // pred_fallthru
          _
      $region48: #{tpu_custom_call.1} parent=5 // pred_fallthru
        _
    $region6: #{tpu_custom_call.1} parent=1 // loop_footer
      %s20 = sadd.s32 1, %s16
    $region7: #{tpu_custom_call.1} parent=1 // loop_footer_branch
      %15 = sbr.rel target = $region3
    $region8: #{tpu_custom_call.1} parent=1 // loop_exit
      _
    %556 = vsyncpa [#allocation3], 1
    %s557 = scalar_lea.sflag [#allocation3], 1
    %558 = vsyncpa %s557, 1
    %559 = vsyncpa [#allocation4], 1
    %s560 = scalar_lea.sflag [#allocation4], 1
    %561 = vsyncpa %s560, 1

</llo_original>
